<compile_context>
chip_gen: v7x
topology: tpu7x:2x2x1
jax: 0.10.0
libtpu: 0.0.40
codegen_flags: <defaults>
</compile_context>

<pallas_src>
import functools

import jax
import jax.numpy as jnp
from jax import lax
from jax.experimental import pallas as pl
from jax.experimental.pallas import tpu as pltpu


# Layer configuration matching the nn.Sequential in DeepSalience.__init__:
#   BN(chi) Conv(chi->128,5x5,p2) ReLU | BN Conv(128->64,5x5,p2) ReLU |
#   BN Conv(64->64,3x3,p1) ReLU | BN Conv(64->64,3x3,p1) ReLU |
#   BN ZeroPad2d(l1,r1,t35,b34) Conv(64->8,(70,3),p0) ReLU |
#   BN Conv(8->1,1x1)                              (no final activation)
_KSIZES = [(5, 5), (5, 5), (3, 3), (3, 3), (70, 3), (1, 1)]
_PADS = [(2, 2, 2, 2), (2, 2, 2, 2), (1, 1, 1, 1), (1, 1, 1, 1),
         (35, 34, 1, 1), (0, 0, 0, 0)]

_VMEM_LIMIT_BYTES = 48 * 1024 * 1024   # > 16/32 MiB scoped defaults, < v7x 64 MiB


def _mid_kernel(x_ref, w_ref, b_ref, s_ref, t_ref, o_ref, *, pads_out):
    """Fused [conv + bias + ReLU + next-layer BN affine + next-layer zero-pad].

    x_ref : (Hp, Wp, Cin)      bf16, already BN-normalized and zero-padded
    w_ref : (KH, KW*Cin, Cout) bf16, conv weight packed so the KW taps are one
                               fat MXU contraction per kernel row
    b_ref : (1, Cout) f32  conv bias
    s_ref : (1, Cout) f32  next layer's BN scale
    t_ref : (1, Cout) f32  next layer's BN shift
    o_ref : (pt+Ho+pb, pl+Wo+pr, Cout) bf16 = next layer's padded input
    """
    Hp, Wp, Cin = x_ref.shape
    KH = w_ref.shape[0]
    KW = w_ref.shape[1] // Cin
    Cout = w_ref.shape[2]
    Ho, Wo = Hp - KH + 1, Wp - KW + 1
    pt, pb, pL, pR = pads_out

    acc = None
    for kh in range(KH):                             # unrolled: KH <= 5 here
        if KW == 1:
            patch = x_ref[kh:kh + Ho, :, :]
        else:
            patch = jnp.concatenate(
                [x_ref[kh:kh + Ho, kw:kw + Wo, :] for kw in range(KW)], axis=-1)
        part = jnp.dot(patch.reshape(Ho * Wo, KW * Cin), w_ref[kh],
                       preferred_element_type=jnp.float32)
        acc = part if acc is None else acc + part

    y = jnp.maximum(acc + b_ref[...], 0.0)           # conv bias + ReLU (f32)
    y = y * s_ref[...] + t_ref[...]                  # next layer's BN affine
    y = y.reshape(Ho, Wo, Cout).astype(o_ref.dtype)

    # Zero only the padding border of the output slab (not the full slab).
    Wn = o_ref.shape[1]
    if pt:
        o_ref[:pt, :, :] = jnp.zeros((pt, Wn, Cout), o_ref.dtype)
    if pb:
        o_ref[pt + Ho:, :, :] = jnp.zeros((pb, Wn, Cout), o_ref.dtype)
    if pL:
        o_ref[pt:pt + Ho, :pL, :] = jnp.zeros((Ho, pL, Cout), o_ref.dtype)
    if pR:
        o_ref[pt:pt + Ho, pL + Wo:, :] = jnp.zeros((Ho, pR, Cout), o_ref.dtype)
    o_ref[pt:pt + Ho, pL:pL + Wo, :] = y


def _head_kernel(x_ref, w_ref, b_ref, w6_ref, b6_ref, o_ref, acc_ref):
    """Layer 5 (70x3 conv + bias + ReLU) with layer 6 (BN + 1x1 conv) folded in.

    x_ref  : (Hp, Wp, Cin)      bf16, already BN5-normalized and zero-padded
    w_ref  : (KH, KW*Cin, C5)   bf16 packed conv-5 weight
    b_ref  : (1, C5) f32        conv-5 bias
    w6_ref : (1, C5) f32        bn6_scale * conv6_weight (folded 1x1 conv)
    b6_ref : (1, 1)  f32        bn6_shift . conv6_weight + conv6_bias
    o_ref  : (Ho, Wo) f32       logits tile (freq x time, lane-dense time axis)
    acc_ref: VMEM (Ho*Wo, C5) f32 accumulator
    """
    Hp, Wp, Cin = x_ref.shape
    KH = w_ref.shape[0]
    KW = w_ref.shape[1] // Cin
    C5 = w_ref.shape[2]
    Ho, Wo = o_ref.shape

    acc_ref[...] = jnp.zeros_like(acc_ref)

    def kh_body(kh, carry):                          # rolled: KH = 70
        parts = [x_ref[pl.ds(kh, Ho), kw:kw + Wo, :] for kw in range(KW)]
        patch = jnp.concatenate(parts, axis=-1).reshape(Ho * Wo, KW * Cin)
        acc_ref[...] += jnp.dot(patch, w_ref[kh],
                                preferred_element_type=jnp.float32)
        return carry

    lax.fori_loop(0, KH, kh_body, 0)

    y5 = jnp.maximum(acc_ref[...] + b_ref[...], 0.0)          # (Ho*Wo, C5) f32
    y5 = y5.reshape(Ho, Wo, C5)
    out = jnp.sum(y5 * w6_ref[...].reshape(1, 1, C5), axis=-1) + b6_ref[...]
    o_ref[...] = out.astype(o_ref.dtype)


def _mid_layer(x, w, b, s, t, *, pads_out):
    B, Hp, Wp, Cin = x.shape
    KH, KWCin, Cout = w.shape
    KW = KWCin // Cin
    Ho, Wo = Hp - KH + 1, Wp - KW + 1
    pt, pb, pL, pR = pads_out
    Hn, Wn = Ho + pt + pb, Wo + pL + pR
    kernel = functools.partial(_mid_kernel, pads_out=pads_out)
    return pl.pallas_call(
        kernel,
        out_shape=jax.ShapeDtypeStruct((B, Hn, Wn, Cout), jnp.bfloat16),
        grid=(B,),
        in_specs=[
            pl.BlockSpec((None, Hp, Wp, Cin), lambda i: (i, 0, 0, 0)),
            pl.BlockSpec((KH, KWCin, Cout), lambda i: (0, 0, 0)),
            pl.BlockSpec((1, Cout), lambda i: (0, 0)),
            pl.BlockSpec((1, Cout), lambda i: (0, 0)),
            pl.BlockSpec((1, Cout), lambda i: (0, 0)),
        ],
        out_specs=pl.BlockSpec((None, Hn, Wn, Cout), lambda i: (i, 0, 0, 0)),
        compiler_params=pltpu.CompilerParams(
            dimension_semantics=("parallel",),
            vmem_limit_bytes=_VMEM_LIMIT_BYTES),
    )(x, w, b, s, t)


def _head_layer(x, w, b, w6, b6):
    B, Hp, Wp, Cin = x.shape
    KH, KWCin, C5 = w.shape
    KW = KWCin // Cin
    Ho, Wo = Hp - KH + 1, Wp - KW + 1
    return pl.pallas_call(
        _head_kernel,
        out_shape=jax.ShapeDtypeStruct((B, Ho, Wo), jnp.float32),
        grid=(B,),
        in_specs=[
            pl.BlockSpec((None, Hp, Wp, Cin), lambda i: (i, 0, 0, 0)),
            pl.BlockSpec((KH, KWCin, C5), lambda i: (0, 0, 0)),
            pl.BlockSpec((1, C5), lambda i: (0, 0)),
            pl.BlockSpec((1, C5), lambda i: (0, 0)),
            pl.BlockSpec((1, 1), lambda i: (0, 0)),
        ],
        out_specs=pl.BlockSpec((None, Ho, Wo), lambda i: (i, 0, 0)),
        scratch_shapes=[pltpu.VMEM((Ho * Wo, C5), jnp.float32)],
        compiler_params=pltpu.CompilerParams(
            dimension_semantics=("parallel",),
            vmem_limit_bytes=_VMEM_LIMIT_BYTES),
    )(x, w, b, w6, b6)


def init_params(key, n_channels):
    chans = [n_channels, 128, 64, 64, 64, 8, 1]
    eps = 1e-3
    params = []
    for (kh, kw), cin, cout in zip(_KSIZES, chans[:-1], chans[1:]):
        key, k1, k2, k3, k4, k5, k6 = jax.random.split(key, 7)
        gamma = 1.0 + 0.1 * jax.random.normal(k1, (cin,), jnp.float32)
        beta = 0.1 * jax.random.normal(k2, (cin,), jnp.float32)
        rmean = 0.1 * jax.random.normal(k3, (cin,), jnp.float32)
        rvar = 1.0 + 0.1 * jax.random.uniform(k4, (cin,), jnp.float32)
        scale = gamma / jnp.sqrt(rvar + eps)
        shift = beta - rmean * scale
        fan_in = kh * kw * cin
        w = jax.random.normal(k5, (kh, kw, cin, cout), jnp.float32) * jnp.sqrt(2.0 / fan_in)
        b = 0.01 * jax.random.normal(k6, (cout,), jnp.float32)
        params.append(dict(scale=scale, shift=shift, w=w, b=b))
    return params


def deep_salience_forward(x_nchw, params, squeeze=True):
    """x_nchw: (B, n_channels, F, T) float32, like the PyTorch module."""
    f32, bf16 = jnp.float32, jnp.bfloat16
    B, C, F, T = x_nchw.shape
    x = jnp.transpose(x_nchw, (0, 2, 3, 1)).astype(f32)            # NHWC

    # ---- layer-1 front end in XLA (input is tiny: C = n_harmonics) ---------
    # BN1 affine + zero-pad + im2col: the 5x5xC taps are folded onto the
    # channel axis, so the first kernel sees a 1x1 conv with K = 25*C — one fat
    # MXU contraction instead of 25 K=C matmuls (and a lane-dense input).
    p0 = params[0]
    x = x * p0["scale"] + p0["shift"]
    pt, pb, pL, pR = _PADS[0]
    KH0, KW0 = _KSIZES[0]
    x = jnp.pad(x, ((0, 0), (pt, pb), (pL, pR), (0, 0))).astype(bf16)
    x = jnp.concatenate(
        [x[:, kh:kh + F, kw:kw + T, :] for kh in range(KH0) for kw in range(KW0)],
        axis=-1)                                                   # (B, F, T, 25*C)

    # ---- layers 1-4: fused conv + bias + ReLU + next BN + next zero-pad ----
    for k in range(4):
        w = params[k]["w"]
        kh, kw, cin, cout = w.shape
        if k == 0:
            wp = w.reshape(1, kh * kw * cin, cout)   # layer 1 is a 1x1 conv now
        else:
            wp = w.reshape(kh, kw * cin, cout)       # fold KW taps into K
        pnext = params[k + 1]
        x = _mid_layer(
            x, wp.astype(bf16),
            params[k]["b"].reshape(1, cout),
            pnext["scale"].reshape(1, cout),
            pnext["shift"].reshape(1, cout),
            pads_out=_PADS[k + 1])

    # ---- layer 5 (70x3 conv) with layer 6 (BN + 1x1 conv) folded in --------
    p5, p6 = params[4], params[5]
    kh, kw, cin, cout = p5["w"].shape                # (70, 3, 64, 8)
    w5 = p5["w"].reshape(kh, kw * cin, cout).astype(bf16)
    w6 = p6["w"].reshape(cout)                       # (8,)
    w6_eff = (p6["scale"] * w6).reshape(1, cout)
    b6_eff = (jnp.dot(p6["shift"], w6) + p6["b"][0]).reshape(1, 1)
    out = _head_layer(x, w5, p5["b"].reshape(1, cout), w6_eff, b6_eff)  # (B,F,T)

    if not squeeze:
        out = out[:, None]
    return out


def reference_forward(x_nchw, params, squeeze=True):
    """Pure-JAX reference (lax.conv), same dtype schedule as the kernels:
    bf16 activation storage / bf16 MXU inputs, f32 accumulation and BN math."""
    f32, bf16 = jnp.float32, jnp.bfloat16
    x = jnp.transpose(x_nchw, (0, 2, 3, 1)).astype(f32)
    for k in range(5):
        p = params[k]
        x = x * p["scale"] + p["shift"]              # BN (eval affine), f32
        pt, pb, pL, pR = _PADS[k]
        x = jnp.pad(x, ((0, 0), (pt, pb), (pL, pR), (0, 0)))
        y = lax.conv_general_dilated(
            x.astype(bf16), p["w"].astype(bf16), (1, 1), "VALID",
            dimension_numbers=("NHWC", "HWIO", "NHWC"),
            preferred_element_type=f32)
        x = jnp.maximum(y + p["b"], 0.0)             # bias + ReLU (f32)
    p = params[5]                                    # layer 6: BN + 1x1 conv
    x = x * p["scale"] + p["shift"]
    w6 = p["w"].reshape(p["w"].shape[2], 1)
    out = jnp.einsum("bhwc,co->bhwo", x, w6) + p["b"]
    out = jnp.transpose(out, (0, 3, 1, 2))
    if squeeze:
        out = out[:, 0]
    return out


if __name__ == "__main__":
    key = jax.random.PRNGKey(0)
    kx, kp = jax.random.split(key)
    B, C, F, T = 2, 4, 16, 16          # batch, harmonics, freqbins, timeframes
    x = jax.random.normal(kx, (B, C, F, T), jnp.float32)
    params = init_params(kp, C)

    out = jax.block_until_ready(deep_salience_forward(x, params, squeeze=True))
    assert out.shape == (B, F, T), out.shape
    assert bool(jnp.all(jnp.isfinite(out)))

    ref = reference_forward(x, params, squeeze=True)
    rel_err = float(jnp.max(jnp.abs(out - ref)) / (jnp.max(jnp.abs(ref)) + 1e-6))
    # Both paths use bf16 MXU inputs with f32 accumulation; the only remaining
    # difference is summation order, so this tolerance is tight.
    assert rel_err < 2e-3, f"mismatch vs reference, rel err = {rel_err}"

    print("KERNEL_OK")
</pallas_src>

<mosaic_0001>
module attributes {stable_mosaic.version = 11 : i64} {
  func.func @_mid_kernel(%arg0: i32, %arg1: memref<1x16x16x100xbf16, #tpu.memory_space<vmem>>, %arg2: memref<1x100x128xbf16, #tpu.memory_space<vmem>>, %arg3: memref<1x128xf32, #tpu.memory_space<vmem>>, %arg4: memref<1x128xf32, #tpu.memory_space<vmem>>, %arg5: memref<1x128xf32, #tpu.memory_space<vmem>>, %arg6: memref<1x20x20x128xbf16, #tpu.memory_space<vmem>>) attributes {dimension_semantics = [#tpu.dimension_semantics<parallel>], iteration_bounds = array<i64: 2>, scalar_prefetch = 0 : i64, scratch_operands = 0 : i64, tpu.core_type = #tpu.core_type<tc>, window_params = [{transform_indices = @transform_0, window_bounds = array<i64: 1, 16, 16, 100>}, {pipeline_mode = #tpu.pipeline_mode<synchronous>, transform_indices = @transform_1, window_bounds = array<i64: 1, 100, 128>}, {pipeline_mode = #tpu.pipeline_mode<synchronous>, transform_indices = @transform_2, window_bounds = array<i64: 1, 128>}, {pipeline_mode = #tpu.pipeline_mode<synchronous>, transform_indices = @transform_3, window_bounds = array<i64: 1, 128>}, {pipeline_mode = #tpu.pipeline_mode<synchronous>, transform_indices = @transform_4, window_bounds = array<i64: 1, 128>}, {transform_indices = @transform_5, window_bounds = array<i64: 1, 20, 20, 128>}]} {
    %c0 = arith.constant 0 : index
    %c0_0 = arith.constant 0 : index
    %c0_1 = arith.constant 0 : index
    %c0_2 = arith.constant 0 : index
    %0 = vector.load %arg1[%c0, %c0_0, %c0_1, %c0_2] : memref<1x16x16x100xbf16, #tpu.memory_space<vmem>>, vector<1x16x16x100xbf16>
    %1 = vector.shape_cast %0 : vector<1x16x16x100xbf16> to vector<16x16x100xbf16>
    %2 = vector.shape_cast %1 : vector<16x16x100xbf16> to vector<256x100xbf16>
    %c0_3 = arith.constant 0 : index
    %c0_4 = arith.constant 0 : index
    %c0_5 = arith.constant 0 : index
    %3 = vector.load %arg2[%c0_3, %c0_4, %c0_5] : memref<1x100x128xbf16, #tpu.memory_space<vmem>>, vector<1x100x128xbf16>
    %4 = vector.shape_cast %3 : vector<1x100x128xbf16> to vector<100x128xbf16>
    %cst = arith.constant dense<0.000000e+00> : vector<256x128xf32>
    %5 = tpu.matmul %2, %4, %cst {dimension_numbers = #tpu.dot_dimension_numbers<[1], [0], [0], [1], [0, 0, 1, 1], [], []>} : vector<256x100xbf16>, vector<100x128xbf16>, vector<256x128xf32> -> vector<256x128xf32>
    %c0_6 = arith.constant 0 : index
    %c0_7 = arith.constant 0 : index
    %6 = vector.load %arg3[%c0_6, %c0_7] : memref<1x128xf32, #tpu.memory_space<vmem>>, vector<1x128xf32>
    %7 = vector.broadcast %6 : vector<1x128xf32> to vector<256x128xf32>
    %8 = arith.addf %5, %7 : vector<256x128xf32>
    %cst_8 = arith.constant 0.000000e+00 : f32
    %9 = vector.broadcast %cst_8 : f32 to vector<256x128xf32>
    %10 = arith.maximumf %8, %9 : vector<256x128xf32>
    %c0_9 = arith.constant 0 : index
    %c0_10 = arith.constant 0 : index
    %11 = vector.load %arg4[%c0_9, %c0_10] : memref<1x128xf32, #tpu.memory_space<vmem>>, vector<1x128xf32>
    %12 = vector.broadcast %11 : vector<1x128xf32> to vector<256x128xf32>
    %13 = arith.mulf %10, %12 : vector<256x128xf32>
    %c0_11 = arith.constant 0 : index
    %c0_12 = arith.constant 0 : index
    %14 = vector.load %arg5[%c0_11, %c0_12] : memref<1x128xf32, #tpu.memory_space<vmem>>, vector<1x128xf32>
    %15 = vector.broadcast %14 : vector<1x128xf32> to vector<256x128xf32>
    %16 = arith.addf %13, %15 : vector<256x128xf32>
    %17 = vector.shape_cast %16 : vector<256x128xf32> to vector<16x16x128xf32>
    %18 = arith.truncf %17 : vector<16x16x128xf32> to vector<16x16x128xbf16>
    %cst_13 = arith.constant 0.000000e+00 : bf16
    %19 = vector.broadcast %cst_13 : bf16 to vector<2x20x128xbf16>
    %c0_14 = arith.constant 0 : index
    %c0_15 = arith.constant 0 : index
    %c0_16 = arith.constant 0 : index
    %c0_17 = arith.constant 0 : index
    %20 = vector.load %arg6[%c0_14, %c0_15, %c0_16, %c0_17] : memref<1x20x20x128xbf16, #tpu.memory_space<vmem>>, vector<1x2x20x128xbf16>
    %21 = vector.shape_cast %20 : vector<1x2x20x128xbf16> to vector<2x20x128xbf16>
    %22 = vector.shape_cast %19 : vector<2x20x128xbf16> to vector<1x2x20x128xbf16>
    tpu.vector_store %arg6[%c0_14, %c0_15, %c0_16, %c0_17], %22 {strides = array<i32>} : memref<1x20x20x128xbf16, #tpu.memory_space<vmem>>, vector<1x2x20x128xbf16>,
    %cst_18 = arith.constant 0.000000e+00 : bf16
    %23 = vector.broadcast %cst_18 : bf16 to vector<2x20x128xbf16>
    %c0_19 = arith.constant 0 : index
    %c18 = arith.constant 18 : index
    %c0_20 = arith.constant 0 : index
    %c0_21 = arith.constant 0 : index
    %24 = vector.load %arg6[%c0_19, %c18, %c0_20, %c0_21] : memref<1x20x20x128xbf16, #tpu.memory_space<vmem>>, vector<1x2x20x128xbf16>
    %25 = vector.shape_cast %24 : vector<1x2x20x128xbf16> to vector<2x20x128xbf16>
    %26 = vector.shape_cast %23 : vector<2x20x128xbf16> to vector<1x2x20x128xbf16>
    tpu.vector_store %arg6[%c0_19, %c18, %c0_20, %c0_21], %26 {strides = array<i32>} : memref<1x20x20x128xbf16, #tpu.memory_space<vmem>>, vector<1x2x20x128xbf16>,
    %cst_22 = arith.constant 0.000000e+00 : bf16
    %27 = vector.broadcast %cst_22 : bf16 to vector<16x2x128xbf16>
    %c0_23 = arith.constant 0 : index
    %c2 = arith.constant 2 : index
    %c0_24 = arith.constant 0 : index
    %c0_25 = arith.constant 0 : index
    %28 = vector.load %arg6[%c0_23, %c2, %c0_24, %c0_25] : memref<1x20x20x128xbf16, #tpu.memory_space<vmem>>, vector<1x16x2x128xbf16>
    %29 = vector.shape_cast %28 : vector<1x16x2x128xbf16> to vector<16x2x128xbf16>
    %30 = vector.shape_cast %27 : vector<16x2x128xbf16> to vector<1x16x2x128xbf16>
    tpu.vector_store %arg6[%c0_23, %c2, %c0_24, %c0_25], %30 {strides = array<i32>} : memref<1x20x20x128xbf16, #tpu.memory_space<vmem>>, vector<1x16x2x128xbf16>,
    %cst_26 = arith.constant 0.000000e+00 : bf16
    %31 = vector.broadcast %cst_26 : bf16 to vector<16x2x128xbf16>
    %c0_27 = arith.constant 0 : index
    %c2_28 = arith.constant 2 : index
    %c18_29 = arith.constant 18 : index
    %c0_30 = arith.constant 0 : index
    %32 = vector.load %arg6[%c0_27, %c2_28, %c18_29, %c0_30] : memref<1x20x20x128xbf16, #tpu.memory_space<vmem>>, vector<1x16x2x128xbf16>
    %33 = vector.shape_cast %32 : vector<1x16x2x128xbf16> to vector<16x2x128xbf16>
    %34 = vector.shape_cast %31 : vector<16x2x128xbf16> to vector<1x16x2x128xbf16>
    tpu.vector_store %arg6[%c0_27, %c2_28, %c18_29, %c0_30], %34 {strides = array<i32>} : memref<1x20x20x128xbf16, #tpu.memory_space<vmem>>, vector<1x16x2x128xbf16>,
    %c0_31 = arith.constant 0 : index
    %c2_32 = arith.constant 2 : index
    %c2_33 = arith.constant 2 : index
    %c0_34 = arith.constant 0 : index
    %35 = vector.load %arg6[%c0_31, %c2_32, %c2_33, %c0_34] : memref<1x20x20x128xbf16, #tpu.memory_space<vmem>>, vector<1x16x16x128xbf16>
    %36 = vector.shape_cast %35 : vector<1x16x16x128xbf16> to vector<16x16x128xbf16>
    %37 = vector.shape_cast %18 : vector<16x16x128xbf16> to vector<1x16x16x128xbf16>
    tpu.vector_store %arg6[%c0_31, %c2_32, %c2_33, %c0_34], %37 {strides = array<i32>} : memref<1x20x20x128xbf16, #tpu.memory_space<vmem>>, vector<1x16x16x128xbf16>,
    return
  }
  func.func @transform_0(%arg0: i32) -> (i32, i32, i32, i32) {
    %c0_i32 = arith.constant 0 : i32
    %c0_i32_0 = arith.constant 0 : i32
    %c0_i32_1 = arith.constant 0 : i32
    %c0_i32_2 = arith.constant 0 : i32
    return %arg0, %c0_i32, %c0_i32_0, %c0_i32_1 : i32, i32, i32, i32
  }
  func.func @transform_1(%arg0: i32) -> (i32, i32, i32) {
    %c0_i32 = arith.constant 0 : i32
    %c0_i32_0 = arith.constant 0 : i32
    %c0_i32_1 = arith.constant 0 : i32
    %c0_i32_2 = arith.constant 0 : i32
    return %c0_i32, %c0_i32_0, %c0_i32_1 : i32, i32, i32
  }
  func.func @transform_2(%arg0: i32) -> (i32, i32) {
    %c0_i32 = arith.constant 0 : i32
    %c0_i32_0 = arith.constant 0 : i32
    %c0_i32_1 = arith.constant 0 : i32
    return %c0_i32, %c0_i32_0 : i32, i32
  }
  func.func @transform_3(%arg0: i32) -> (i32, i32) {
    %c0_i32 = arith.constant 0 : i32
    %c0_i32_0 = arith.constant 0 : i32
    %c0_i32_1 = arith.constant 0 : i32
    return %c0_i32, %c0_i32_0 : i32, i32
  }
  func.func @transform_4(%arg0: i32) -> (i32, i32) {
    %c0_i32 = arith.constant 0 : i32
    %c0_i32_0 = arith.constant 0 : i32
    %c0_i32_1 = arith.constant 0 : i32
    return %c0_i32, %c0_i32_0 : i32, i32
  }
  func.func @transform_5(%arg0: i32) -> (i32, i32, i32, i32) {
    %c0_i32 = arith.constant 0 : i32
    %c0_i32_0 = arith.constant 0 : i32
    %c0_i32_1 = arith.constant 0 : i32
    %c0_i32_2 = arith.constant 0 : i32
    return %arg0, %c0_i32, %c0_i32_0, %c0_i32_1 : i32, i32, i32, i32
  }
}

</mosaic_0001>

<llo_original>
// kernel: tpu_custom_call.1
$region0: #{tpu_custom_call.1}
  #allocation0 [shape = 'u32[]', space=smem, size = 0x4, offset = 0x4, fixed_abs, tag = 'smem constant byte address 0x4 - core index']
  #allocation1 [shape = 'u32[144,128]{1,0:T(1,128)}', space=vmem, size = 0x12000, scoped, tag = 'internal scratch']
  %s0 = inlined_call_operand.hbm [shape: bf16[2,16,16,100], index: 0, kind: input, shape index: {}]
  %s1 = inlined_call_operand.hbm [shape: bf16[1,100,128], index: 1, kind: input, shape index: {}]
  %s2 = inlined_call_operand.vmem [shape: f32[1,128], index: 2, kind: input, shape index: {}]
  %s3 = inlined_call_operand.vmem [shape: f32[1,128], index: 3, kind: input, shape index: {}]
  %s4 = inlined_call_operand.vmem [shape: f32[1,128], index: 4, kind: input, shape index: {}]
  %s5 = inlined_call_operand.vmem [shape: bf16[2,20,20,128], index: 5, kind: output, shape index: {}]
  %s6 = sld [smem:[#allocation0]]
  $region61: #{tpu_custom_call.1} parent=0
    _
  %s8 = ssub.s32 1, %s6
  %s9 = scalar_select 0, %s8, %s6
  $region1: #{tpu_custom_call.1} parent=0
    #allocation2 [shape = 'u8[131072]{0}', space=vmem, size = 0x20000, scoped, tag = 'input window, operand 0']
    #allocation3 [shape = 's32[2]{0}', space=sflag, size = 0x8, scoped, tag = 'scoped memory for tpu_custom_call.1']
    #allocation4 [shape = 'u8[26624]{0}', space=vmem, size = 0x6800, scoped, tag = 'input window, operand 1, single buffered']
    #allocation5 [shape = 's32[1]{0}', space=sflag, size = 0x4, scoped, tag = 'scoped memory for tpu_custom_call.1']
    %10 = vsyncpa [#allocation3], 0
    %s11 = scalar_lea.sflag [#allocation3], 1
    %12 = vsyncpa %s11, 0
    %13 = vsyncpa [#allocation5], 0
    loop: start=0, step=1, limit=4
    $region2: #{tpu_custom_call.1} parent=1 // loop_pre_header
      _
    $region3: #{tpu_custom_call.1} parent=1 // loop_header
      %s15 = sphi 0, %s19
      %p16 = scmp.ge.s32.totalorder %s15, 4
      %s25 = sphi 0, %s27
      %s28 = sphi 0, %s25
      %s29 = sphi 0, %s28
      %s45 = sphi 0, %s29
      %s49 = sphi 0, %s49
      %s51 = sphi 0, %s49
      %s52 = sphi 0, %s51
      %s66 = sphi 0, %s52
      %s70 = sphi 0, %s70
      %s72 = sphi 0, %s70
      %s73 = sphi 0, %s72
      %s87 = sphi 0, %s73
      %s91 = sphi 0, %s91
      %s93 = sphi 0, %s91
      %s94 = sphi 0, %s93
      %s108 = sphi 0, %s94
      %s112 = sphi 0, %s112
      %s114 = sphi 0, %s112
      %s115 = sphi 0, %s114
      %s129 = sphi 0, %s115
      %s135 = sphi 0, %s137
      %s138 = sphi 0, %s135
      %s139 = sphi 0, %s138
      %s155 = sphi 0, %s139
    $region4: #{tpu_custom_call.1} parent=1 // loop_header_branch
      %18 = sbr.rel (%p16) target = $region8
    $region5: #{tpu_custom_call.1} parent=1 // loop_body
      %s20 = ssub.s32 %s15, 1
      %s21 = ssub.s32 %s15, 2
      %s22 = sadd.s32 %s15, 1
      %s23 = ssub.s32 %s15, %s22
      %p24 = scmp.eq.s32.totalorder %s23, 0
      %s26 = sadd.s32 %s25, 1
      %s27 = scalar_select %p24, %s25, %s26
      %p30 = pneg %p24
      %p31 = scmp.eq.s32.totalorder %s15, 1
      %p32 = por %p30, %p31
      %p33 = scmp.ne.s32.totalorder %s25, %s28
      %p34 = scmp.eq.s32.totalorder %s15, 0
      %p35 = por %p33, %p34
      %p36 = scmp.ne.s32.totalorder %s25, %s28
      %p37 = scmp.eq.s32.totalorder %s20, 1
      %p38 = por %p36, %p37
      %p39 = scmp.ne.s32.totalorder %s28, %s29
      %p40 = scmp.eq.s32.totalorder %s20, 0
      %p41 = por %p39, %p40
      %p42 = scmp.ne.s32.totalorder %s28, %s29
      %p43 = scmp.eq.s32.totalorder %s21, 1
      %p44 = por %p42, %p43
      %p46 = scmp.ne.s32.totalorder %s29, %s45
      %p47 = scmp.eq.s32.totalorder %s21, 0
      %p48 = por %p46, %p47
      %s50 = sadd.s32 %s49, 1
      %p53 = scmp.eq.s32.totalorder %s15, 1
      %p54 = scmp.ne.s32.totalorder %s49, %s51
      %p55 = scmp.eq.s32.totalorder %s15, 0
      %p56 = por %p54, %p55
      %p57 = scmp.ne.s32.totalorder %s49, %s51
      %p58 = scmp.eq.s32.totalorder %s20, 1
      %p59 = por %p57, %p58
      %p60 = scmp.ne.s32.totalorder %s51, %s52
      %p61 = scmp.eq.s32.totalorder %s20, 0
      %p62 = por %p60, %p61
      %p63 = scmp.ne.s32.totalorder %s51, %s52
      %p64 = scmp.eq.s32.totalorder %s21, 1
      %p65 = por %p63, %p64
      %p67 = scmp.ne.s32.totalorder %s52, %s66
      %p68 = scmp.eq.s32.totalorder %s21, 0
      %p69 = por %p67, %p68
      %s71 = sadd.s32 %s70, 1
      %p74 = scmp.eq.s32.totalorder %s15, 1
      %p75 = scmp.ne.s32.totalorder %s70, %s72
      %p76 = scmp.eq.s32.totalorder %s15, 0
      %p77 = por %p75, %p76
      %p78 = scmp.ne.s32.totalorder %s70, %s72
      %p79 = scmp.eq.s32.totalorder %s20, 1
      %p80 = por %p78, %p79
      %p81 = scmp.ne.s32.totalorder %s72, %s73
      %p82 = scmp.eq.s32.totalorder %s20, 0
      %p83 = por %p81, %p82
      %p84 = scmp.ne.s32.totalorder %s72, %s73
      %p85 = scmp.eq.s32.totalorder %s21, 1
      %p86 = por %p84, %p85
      %p88 = scmp.ne.s32.totalorder %s73, %s87
      %p89 = scmp.eq.s32.totalorder %s21, 0
      %p90 = por %p88, %p89
      %s92 = sadd.s32 %s91, 1
      %p95 = scmp.eq.s32.totalorder %s15, 1
      %p96 = scmp.ne.s32.totalorder %s91, %s93
      %p97 = scmp.eq.s32.totalorder %s15, 0
      %p98 = por %p96, %p97
      %p99 = scmp.ne.s32.totalorder %s91, %s93
      %p100 = scmp.eq.s32.totalorder %s20, 1
      %p101 = por %p99, %p100
      %p102 = scmp.ne.s32.totalorder %s93, %s94
      %p103 = scmp.eq.s32.totalorder %s20, 0
      %p104 = por %p102, %p103
      %p105 = scmp.ne.s32.totalorder %s93, %s94
      %p106 = scmp.eq.s32.totalorder %s21, 1
      %p107 = por %p105, %p106
      %p109 = scmp.ne.s32.totalorder %s94, %s108
      %p110 = scmp.eq.s32.totalorder %s21, 0
      %p111 = por %p109, %p110
      %s113 = sadd.s32 %s112, 1
      %p116 = scmp.eq.s32.totalorder %s15, 1
      %p117 = scmp.ne.s32.totalorder %s112, %s114
      %p118 = scmp.eq.s32.totalorder %s15, 0
      %p119 = por %p117, %p118
      %p120 = scmp.ne.s32.totalorder %s112, %s114
      %p121 = scmp.eq.s32.totalorder %s20, 1
      %p122 = por %p120, %p121
      %p123 = scmp.ne.s32.totalorder %s114, %s115
      %p124 = scmp.eq.s32.totalorder %s20, 0
      %p125 = por %p123, %p124
      %p126 = scmp.ne.s32.totalorder %s114, %s115
      %p127 = scmp.eq.s32.totalorder %s21, 1
      %p128 = por %p126, %p127
      %p130 = scmp.ne.s32.totalorder %s115, %s129
      %p131 = scmp.eq.s32.totalorder %s21, 0
      %p132 = por %p130, %p131
      %s133 = ssub.s32 %s15, %s22
      %p134 = scmp.eq.s32.totalorder %s133, 0
      %s136 = sadd.s32 %s135, 1
      %s137 = scalar_select %p134, %s135, %s136
      %p140 = pneg %p134
      %p141 = scmp.eq.s32.totalorder %s15, 1
      %p142 = por %p140, %p141
      %p143 = scmp.ne.s32.totalorder %s135, %s138
      %p144 = scmp.eq.s32.totalorder %s15, 0
      %p145 = por %p143, %p144
      %p146 = scmp.ne.s32.totalorder %s135, %s138
      %p147 = scmp.eq.s32.totalorder %s20, 1
      %p148 = por %p146, %p147
      %p149 = scmp.ne.s32.totalorder %s138, %s139
      %p150 = scmp.eq.s32.totalorder %s20, 0
      %p151 = por %p149, %p150
      %p152 = scmp.ne.s32.totalorder %s138, %s139
      %p153 = scmp.eq.s32.totalorder %s21, 1
      %p154 = por %p152, %p153
      %p156 = scmp.ne.s32.totalorder %s139, %s155
      %p157 = scmp.eq.s32.totalorder %s21, 0
      %p158 = por %p156, %p157
      %p159 = scmp.le.s32.totalorder 1, %s15
      %p160 = scmp.lt.s32.totalorder %s15, 3
      %p161 = pnand %p159, %p160
      %p162 = pneg %p161
      // Predicated region
      $region9: #{tpu_custom_call.1} parent=5 // pred_check
        _
      $region10: #{tpu_custom_call.1} parent=5 // pred_check_branch
        %164 = sbr.rel (%p161) target = $region12
      $region11: #{tpu_custom_call.1} parent=5 // pred_region
        %s165 = ssub.s32 %s15, 1
        // Predicated region
        $region13: #{tpu_custom_call.1} parent=11 // pred_check
          %p166 = pneg %p62
        $region14: #{tpu_custom_call.1} parent=11 // pred_check_branch
          %168 = sbr.rel (%p166) target = $region16
        $region15: #{tpu_custom_call.1} parent=11 // pred_region
          %s170 = ssub.s32 832, 832
          %171 = vsyncadd [#allocation5], %s170
          %s172 = sshll.u32 [#allocation4], 4
          %s173 = int_to_ptr.vmem [resolvable:$true] %s172
          %178 = dma.hbm_to_vmem [thread:$0]  %s1, 832, %s173, [#allocation5], 64, 64, 4
        $region16: #{tpu_custom_call.1} parent=11 // pred_fallthru
          _
        // Predicated region
        $region17: #{tpu_custom_call.1} parent=11 // pred_check
          %p179 = pneg %p83
        $region18: #{tpu_custom_call.1} parent=11 // pred_check_branch
          %181 = sbr.rel (%p179) target = $region20
        $region19: #{tpu_custom_call.1} parent=11 // pred_region
          _
        $region20: #{tpu_custom_call.1} parent=11 // pred_fallthru
          _
        // Predicated region
        $region21: #{tpu_custom_call.1} parent=11 // pred_check
          %p182 = pneg %p104
        $region22: #{tpu_custom_call.1} parent=11 // pred_check_branch
          %184 = sbr.rel (%p182) target = $region24
        $region23: #{tpu_custom_call.1} parent=11 // pred_region
          _
        $region24: #{tpu_custom_call.1} parent=11 // pred_fallthru
          _
        // Predicated region
        $region25: #{tpu_custom_call.1} parent=11 // pred_check
          %p185 = pneg %p125
        $region26: #{tpu_custom_call.1} parent=11 // pred_check_branch
          %187 = sbr.rel (%p185) target = $region28
        $region27: #{tpu_custom_call.1} parent=11 // pred_region
          _
        $region28: #{tpu_custom_call.1} parent=11 // pred_fallthru
          _
      $region12: #{tpu_custom_call.1} parent=5 // pred_fallthru
        _
      %p188 = scmp.lt.s32.totalorder %s15, 2
      // Predicated region
      $region29: #{tpu_custom_call.1} parent=5 // pred_check
        %p189 = pneg %p188
      $region30: #{tpu_custom_call.1} parent=5 // pred_check_branch
        %191 = sbr.rel (%p189) target = $region32
      $region31: #{tpu_custom_call.1} parent=5 // pred_region
        // Predicated region
        $region33: #{tpu_custom_call.1} parent=31 // pred_check
          %p192 = pneg %p35
        $region34: #{tpu_custom_call.1} parent=31 // pred_check_branch
          %194 = sbr.rel (%p192) target = $region36
        $region35: #{tpu_custom_call.1} parent=31 // pred_region
          %s195 = sand.u32 %s25, 1
          %s196 = scalar_lea.sflag [#allocation3], %s195
          %s197 = sand.u32 %s25, 1
          %s198 = smul.addr %s197, 128
          %s199 = scalar_lea.vmem [#allocation2], %s198
          %s201 = ssub.s32 2048, 2048
          %202 = vsyncadd %s196, %s201
          %s203 = smul.addr %s15, 32
          %s204 = smul.addr %s203, 64
          %s205 = scalar_lea.hbm %s0, %s204
          %s206 = sshll.u32 %s199, 4
          %s207 = int_to_ptr.vmem [resolvable:$true] %s206
          %212 = dma.hbm_to_vmem [thread:$0]  %s205, 2048, %s207, %s196, 64, 64, 4
        $region36: #{tpu_custom_call.1} parent=31 // pred_fallthru
          _
      $region32: #{tpu_custom_call.1} parent=5 // pred_fallthru
        _
      %p213 = scmp.le.s32.totalorder 1, %s15
      %p214 = scmp.lt.s32.totalorder %s15, 3
      %p215 = pnand %p213, %p214
      %p216 = pneg %p215
      // Predicated region
      $region37: #{tpu_custom_call.1} parent=5 // pred_check
        _
      $region38: #{tpu_custom_call.1} parent=5 // pred_check_branch
        %218 = sbr.rel (%p215) target = $region40
      $region39: #{tpu_custom_call.1} parent=5 // pred_region
        %s219 = ssub.s32 %s15, 1
        %s220 = sand.u32 %s28, 1
        %s221 = scalar_lea.sflag [#allocation3], %s220
        %s222 = sand.u32 %s28, 1
        %s223 = smul.addr %s222, 128
        %s224 = scalar_lea.vmem [#allocation2], %s223
        // Predicated region
        $region41: #{tpu_custom_call.1} parent=39 // pred_check
          %p225 = pneg %p41
        $region42: #{tpu_custom_call.1} parent=39 // pred_check_branch
          %227 = sbr.rel (%p225) target = $region44
        $region43: #{tpu_custom_call.1} parent=39 // pred_region
          %228 = dma.done %s221, 2048
        $region44: #{tpu_custom_call.1} parent=39 // pred_fallthru
          _
        // Predicated region
        $region45: #{tpu_custom_call.1} parent=39 // pred_check
          %p229 = pneg %p62
        $region46: #{tpu_custom_call.1} parent=39 // pred_check_branch
          %231 = sbr.rel (%p229) target = $region48
        $region47: #{tpu_custom_call.1} parent=39 // pred_region
          %232 = dma.done [#allocation5], 832
        $region48: #{tpu_custom_call.1} parent=39 // pred_fallthru
          _
        %s233 = sand.u32 %s28, 1
        %s234 = scalar_lea.sflag [#allocation3], %s233
        %s235 = sand.u32 %s28, 1
        %s236 = smul.addr %s235, 128
        %s237 = scalar_lea.vmem [#allocation2], %s236
        %p238 = pneg %p41
        %p239 = pneg %p38
        %p240 = pneg %p62
        %p241 = pneg %p59
        %p242 = pneg %p83
        %p243 = pneg %p80
        %p244 = pneg %p104
        %p245 = pneg %p101
        %p246 = pneg %p125
        %p247 = pneg %p122
        %p248 = pneg %p151
        %p249 = pneg %p148
        %p250 = scmp.lt.s32.totalorder %s20, 1
        %s251 = scalar_select %p250, %s20, 1
        %s252 = smul.addr %s251, 60
        %s253 = smul.addr %s252, 4
        %s254 = scalar_lea.vmem %s5, %s253
        %p255 = scmp.lt.s32.totalorder %s20, 1
        %s256 = scalar_select %p255, %s20, 1
        %s257 = smul.addr %s256, 60
        %s258 = smul.addr %s257, 4
        %s259 = scalar_lea.vmem %s5, %s258
        %v261 = vld [vmem:[%s224] sm:$0xf]
        %v262 = vld [vmem:[%s224 + $0x4] sm:$0xf]
        %v263 = vld [vmem:[%s224 + $0x8] sm:$0xf]
        %v264 = vld [vmem:[%s224 + $0xc] sm:$0xf]
        %v265 = vld [vmem:[%s224 + $0x10] sm:$0xf]
        %v266 = vld [vmem:[%s224 + $0x14] sm:$0xf]
        %v267 = vld [vmem:[%s224 + $0x18] sm:$0xf]
        %v268 = vld [vmem:[%s224 + $0x1c] sm:$0xf]
        %v269 = vld [vmem:[%s224 + $0x20] sm:$0xf]
        %v270 = vld [vmem:[%s224 + $0x24] sm:$0xf]
        %v271 = vld [vmem:[%s224 + $0x28] sm:$0xf]
        %v272 = vld [vmem:[%s224 + $0x2c] sm:$0xf]
        %v273 = vld [vmem:[%s224 + $0x30] sm:$0xf]
        %v274 = vld [vmem:[%s224 + $0x34] sm:$0xf]
        %v275 = vld [vmem:[%s224 + $0x38] sm:$0xf]
        %v276 = vld [vmem:[%s224 + $0x3c] sm:$0xf]
        %v277 = vld [vmem:[%s224 + $0x40] sm:$0xf]
        %v278 = vld [vmem:[%s224 + $0x44] sm:$0xf]
        %v279 = vld [vmem:[%s224 + $0x48] sm:$0xf]
        %v280 = vld [vmem:[%s224 + $0x4c] sm:$0xf]
        %v281 = vld [vmem:[%s224 + $0x50] sm:$0xf]
        %v282 = vld [vmem:[%s224 + $0x54] sm:$0xf]
        %v283 = vld [vmem:[%s224 + $0x58] sm:$0xf]
        %v284 = vld [vmem:[%s224 + $0x5c] sm:$0xf]
        %v285 = vld [vmem:[%s224 + $0x60] sm:$0xf]
        %v286 = vld [vmem:[%s224 + $0x64] sm:$0xf]
        %v287 = vld [vmem:[%s224 + $0x68] sm:$0xf]
        %v288 = vld [vmem:[%s224 + $0x6c] sm:$0xf]
        %v289 = vld [vmem:[%s224 + $0x70] sm:$0xf]
        %v290 = vld [vmem:[%s224 + $0x74] sm:$0xf]
        %v291 = vld [vmem:[%s224 + $0x78] sm:$0xf]
        %v292 = vld [vmem:[%s224 + $0x7c] sm:$0xf]
        %v293 = vld [vmem:[#allocation4] sm:$0xf]
        %v294 = vld [vmem:[#allocation4 + $0x4] sm:$0xf]
        %v295 = vld [vmem:[#allocation4 + $0x8] sm:$0xf]
        %v296 = vld [vmem:[#allocation4 + $0xc] sm:$0xf]
        %v297 = vld [vmem:[#allocation4 + $0x10] sm:$0xf]
        %v298 = vld [vmem:[#allocation4 + $0x14] sm:$0xf]
        %v299 = vld [vmem:[#allocation4 + $0x18] sm:$0xf]
        %v300 = vld [vmem:[#allocation4 + $0x1c] sm:$0xf]
        %v301 = vld [vmem:[#allocation4 + $0x20] sm:$0xf]
        %v302 = vld [vmem:[#allocation4 + $0x24] sm:$0xf]
        %v303 = vld [vmem:[#allocation4 + $0x28] sm:$0xf]
        %v304 = vld [vmem:[#allocation4 + $0x2c] sm:$0xf]
        %v305 = vld [vmem:[#allocation4 + $0x30] sm:$0x3]
        %v306 = vld [vmem:[%s2] sm:$0x1]
        %v308 = vlaneseq
        %v309 = vshrl.u32 %v308, 7
        %v310 = vsub.s32 0, %v309
        %v311 = vrot.slane %v306, %v310
        %v345 = vunpack.c.l.b16 %v261
        %v346 = vunpack.c.l.b16 %v262
        %v347 = vunpack.c.l.b16 %v263
        %v348 = vunpack.c.l.b16 %v264
        %v349 = vunpack.c.l.b16 %v265
        %v350 = vunpack.c.l.b16 %v266
        %v351 = vunpack.c.l.b16 %v267
        %v352 = vunpack.c.l.b16 %v268
        %v353 = vunpack.c.l.b16 %v269
        %v354 = vunpack.c.l.b16 %v270
        %v355 = vunpack.c.l.b16 %v271
        %v356 = vunpack.c.l.b16 %v272
        %v357 = vunpack.c.l.b16 %v273
        %v358 = vunpack.c.l.b16 %v274
        %v359 = vunpack.c.l.b16 %v275
        %v360 = vunpack.c.l.b16 %v276
        %v361 = vunpack.c.l.b16 %v277
        %v362 = vunpack.c.l.b16 %v278
        %v363 = vunpack.c.l.b16 %v279
        %v364 = vunpack.c.l.b16 %v280
        %v365 = vunpack.c.l.b16 %v281
        %v366 = vunpack.c.l.b16 %v282
        %v367 = vunpack.c.l.b16 %v283
        %v368 = vunpack.c.l.b16 %v284
        %v369 = vunpack.c.l.b16 %v285
        %v370 = vunpack.c.l.b16 %v286
        %v371 = vunpack.c.l.b16 %v287
        %v372 = vunpack.c.l.b16 %v288
        %v373 = vunpack.c.l.b16 %v289
        %v374 = vunpack.c.l.b16 %v290
        %v375 = vunpack.c.l.b16 %v291
        %v376 = vunpack.c.l.b16 %v292
        %v377 = vpack.c.b16 %v346, %v345
        %v378 = vpack.c.b16 %v348, %v347
        %v379 = vpack.c.b16 %v350, %v349
        %v380 = vpack.c.b16 %v352, %v351
        %v381 = vpack.c.b16 %v354, %v353
        %v382 = vpack.c.b16 %v356, %v355
        %v383 = vpack.c.b16 %v358, %v357
        %v384 = vpack.c.b16 %v360, %v359
        %v385 = vpack.c.b16 %v362, %v361
        %v386 = vpack.c.b16 %v364, %v363
        %v387 = vpack.c.b16 %v366, %v365
        %v388 = vpack.c.b16 %v368, %v367
        %v389 = vpack.c.b16 %v370, %v369
        %v390 = vpack.c.b16 %v372, %v371
        %v391 = vpack.c.b16 %v374, %v373
        %v392 = vpack.c.b16 %v376, %v375
        %v406 = vunpack.c.l.b16 %v293
        %v407 = vunpack.c.l.b16 %v294
        %v408 = vunpack.c.l.b16 %v295
        %v409 = vunpack.c.l.b16 %v296
        %v410 = vunpack.c.l.b16 %v297
        %v411 = vunpack.c.l.b16 %v298
        %v412 = vunpack.c.l.b16 %v299
        %v413 = vunpack.c.l.b16 %v300
        %v414 = vunpack.c.l.b16 %v301
        %v415 = vunpack.c.l.b16 %v302
        %v416 = vunpack.c.l.b16 %v303
        %v417 = vunpack.c.l.b16 %v304
        %v418 = vunpack.c.l.b16 %v305
        %v419 = vpack.c.b16 %v407, %v406
        %v420 = vpack.c.b16 %v409, %v408
        %v421 = vpack.c.b16 %v411, %v410
        %v422 = vpack.c.b16 %v413, %v412
        %v423 = vpack.c.b16 %v415, %v414
        %v424 = vpack.c.b16 %v417, %v416
        %v425 = vpack.c.b16 %v418, %v418
        %vm432 = vcmask 818176
        %v434 = vsel %vm432, %v377, 0
        %v437 = vsel %vm432, %v378, 0
        %v440 = vsel %vm432, %v379, 0
        %v443 = vsel %vm432, %v380, 0
        %v446 = vsel %vm432, %v381, 0
        %v449 = vsel %vm432, %v382, 0
        %v452 = vsel %vm432, %v383, 0
        %v455 = vsel %vm432, %v384, 0
        %v458 = vsel %vm432, %v385, 0
        %v461 = vsel %vm432, %v386, 0
        %v464 = vsel %vm432, %v387, 0
        %v467 = vsel %vm432, %v388, 0
        %v470 = vsel %vm432, %v389, 0
        %v473 = vsel %vm432, %v390, 0
        %v476 = vsel %vm432, %v391, 0
        %v479 = vsel %vm432, %v392, 0
        %vm481 = vcmask 1041408
        %v483 = vsel %vm481, %v425, 0
        %485 = vmatprep.subr.bf16.mxu0 0
        %486 = vmatpush1.bf16.msra.mxu0 %v419
        %487 = vmatprep.subr.bf16.mxu0 0
        %488 = vmatpush1.bf16.msra.mxu0 %v420
        %489 = vmatprep.subr.bf16.mxu0 0
        %490 = vmatpush1.bf16.msra.mxu0 %v421
        %491 = vmatprep.subr.bf16.mxu0 0
        %492 = vmatpush1.bf16.msra.mxu0 %v422
        %493 = vmatprep.subr.bf16.mxu0 0
        %494 = vmatpush1.bf16.msra.mxu0 %v423
        %495 = vmatprep.subr.bf16.mxu0 0
        %496 = vmatpush1.bf16.msra.mxu0 %v424
        %497 = vmatprep.subr.bf16.mxu0 0
        %498 = vmatpush1.bf16.msra.mxu0 %v483
        %499 = vmatprep.subr.bf16.mxu0 0
        %500 = vmatpush1.bf16.msra.mxu0 0
        %501 = vmatprep.subr.bf16.mxu0 0
        %502 = vmatpush1.bf16.msra.mxu0 0
        %503 = vmatprep.subr.bf16.mxu0 0
        %504 = vmatpush1.bf16.msra.mxu0 0
        %505 = vmatprep.subr.bf16.mxu0 0
        %506 = vmatpush1.bf16.msra.mxu0 0
        %507 = vmatprep.subr.bf16.mxu0 0
        %508 = vmatpush1.bf16.msra.mxu0 0
        %509 = vmatprep.subr.bf16.mxu0 0
        %510 = vmatpush1.bf16.msra.mxu0 0
        %511 = vmatprep.subr.bf16.mxu0 0
        %512 = vmatpush1.bf16.msra.mxu0 0
        %513 = vmatprep.subr.bf16.mxu0 0
        %514 = vmatpush1.bf16.msra.mxu0 0
        %515 = vmatprep.subr.bf16.mxu0 0
        %516 = vmatpush1.bf16.msra.mxu0 0
        %517 = vmatprep.mubr.bf16.mxu0 0
        %518 = vmatmul.mubr.bf16.gmra.mrb[0].mxu0 %v434
        %v519 = vpop.f32.mrb[0].mxu0
        %v520 = vadd.f32 %v311, %v519
        %v521 = vpop.f32.mrb[0].mxu0
        %v522 = vpop.f32.mrb[0].mxu0
        %v523 = vadd.f32 %v311, %v522
        %v524 = vpop.f32.mrb[0].mxu0
        %525 = vmatprep.mubr.bf16.mxu0 0
        %526 = vmatmul.mubr.bf16.gmra.mrb[0].mxu0 %v437
        %v527 = vpop.f32.mrb[0].mxu0
        %v528 = vadd.f32 %v311, %v527
        %v529 = vpop.f32.mrb[0].mxu0
        %v530 = vpop.f32.mrb[0].mxu0
        %v531 = vadd.f32 %v311, %v530
        %v532 = vpop.f32.mrb[0].mxu0
        %533 = vmatprep.mubr.bf16.mxu0 0
        %534 = vmatmul.mubr.bf16.gmra.mrb[0].mxu0 %v440
        %v535 = vpop.f32.mrb[0].mxu0
        %v536 = vadd.f32 %v311, %v535
        %v537 = vpop.f32.mrb[0].mxu0
        %v538 = vpop.f32.mrb[0].mxu0
        %v539 = vadd.f32 %v311, %v538
        %v540 = vpop.f32.mrb[0].mxu0
        %541 = vmatprep.mubr.bf16.mxu0 0
        %542 = vmatmul.mubr.bf16.gmra.mrb[0].mxu0 %v443
        %v543 = vpop.f32.mrb[0].mxu0
        %v544 = vadd.f32 %v311, %v543
        %v545 = vpop.f32.mrb[0].mxu0
        %v546 = vpop.f32.mrb[0].mxu0
        %v547 = vadd.f32 %v311, %v546
        %v548 = vpop.f32.mrb[0].mxu0
        %549 = vmatprep.mubr.bf16.mxu0 0
        %550 = vmatmul.mubr.bf16.gmra.mrb[0].mxu0 %v446
        %v551 = vpop.f32.mrb[0].mxu0
        %v552 = vadd.f32 %v311, %v551
        %v553 = vpop.f32.mrb[0].mxu0
        %v554 = vpop.f32.mrb[0].mxu0
        %v555 = vadd.f32 %v311, %v554
        %v556 = vpop.f32.mrb[0].mxu0
        %557 = vmatprep.mubr.bf16.mxu0 0
        %558 = vmatmul.mubr.bf16.gmra.mrb[0].mxu0 %v449
        %v559 = vpop.f32.mrb[0].mxu0
        %v560 = vadd.f32 %v311, %v559
        %v561 = vpop.f32.mrb[0].mxu0
        %v562 = vpop.f32.mrb[0].mxu0
        %v563 = vadd.f32 %v311, %v562
        %v564 = vpop.f32.mrb[0].mxu0
        %565 = vmatprep.mubr.bf16.mxu0 0
        %566 = vmatmul.mubr.bf16.gmra.mrb[0].mxu0 %v452
        %v567 = vpop.f32.mrb[0].mxu0
        %v568 = vadd.f32 %v311, %v567
        %v569 = vpop.f32.mrb[0].mxu0
        %v570 = vpop.f32.mrb[0].mxu0
        %v571 = vadd.f32 %v311, %v570
        %v572 = vpop.f32.mrb[0].mxu0
        %573 = vmatprep.mubr.bf16.mxu0 0
        %574 = vmatmul.mubr.bf16.gmra.mrb[0].mxu0 %v455
        %v575 = vpop.f32.mrb[0].mxu0
        %v576 = vadd.f32 %v311, %v575
        %v577 = vpop.f32.mrb[0].mxu0
        %v578 = vpop.f32.mrb[0].mxu0
        %v579 = vadd.f32 %v311, %v578
        %v580 = vpop.f32.mrb[0].mxu0
        %581 = vmatprep.mubr.bf16.mxu0 0
        %582 = vmatmul.mubr.bf16.gmra.mrb[0].mxu0 %v458
        %v583 = vpop.f32.mrb[0].mxu0
        %v584 = vadd.f32 %v311, %v583
        %v585 = vpop.f32.mrb[0].mxu0
        %v586 = vpop.f32.mrb[0].mxu0
        %v587 = vadd.f32 %v311, %v586
        %v588 = vpop.f32.mrb[0].mxu0
        %589 = vmatprep.mubr.bf16.mxu0 0
        %590 = vmatmul.mubr.bf16.gmra.mrb[0].mxu0 %v461
        %v591 = vpop.f32.mrb[0].mxu0
        %v592 = vadd.f32 %v311, %v591
        %v593 = vpop.f32.mrb[0].mxu0
        %v594 = vpop.f32.mrb[0].mxu0
        %v595 = vadd.f32 %v311, %v594
        %v596 = vpop.f32.mrb[0].mxu0
        %597 = vmatprep.mubr.bf16.mxu0 0
        %598 = vmatmul.mubr.bf16.gmra.mrb[0].mxu0 %v464
        %v599 = vpop.f32.mrb[0].mxu0
        %v600 = vadd.f32 %v311, %v599
        %v601 = vpop.f32.mrb[0].mxu0
        %v602 = vpop.f32.mrb[0].mxu0
        %v603 = vadd.f32 %v311, %v602
        %v604 = vpop.f32.mrb[0].mxu0
        %605 = vmatprep.mubr.bf16.mxu0 0
        %606 = vmatmul.mubr.bf16.gmra.mrb[0].mxu0 %v467
        %v607 = vpop.f32.mrb[0].mxu0
        %v608 = vadd.f32 %v311, %v607
        %v609 = vpop.f32.mrb[0].mxu0
        %v610 = vpop.f32.mrb[0].mxu0
        %v611 = vadd.f32 %v311, %v610
        %v612 = vpop.f32.mrb[0].mxu0
        %613 = vmatprep.mubr.bf16.mxu0 0
        %614 = vmatmul.mubr.bf16.gmra.mrb[0].mxu0 %v470
        %v615 = vpop.f32.mrb[0].mxu0
        %v616 = vadd.f32 %v311, %v615
        %v617 = vpop.f32.mrb[0].mxu0
        %v618 = vpop.f32.mrb[0].mxu0
        %v619 = vadd.f32 %v311, %v618
        %v620 = vpop.f32.mrb[0].mxu0
        %621 = vmatprep.mubr.bf16.mxu0 0
        %622 = vmatmul.mubr.bf16.gmra.mrb[0].mxu0 %v473
        %v623 = vpop.f32.mrb[0].mxu0
        %v624 = vadd.f32 %v311, %v623
        %v625 = vpop.f32.mrb[0].mxu0
        %v626 = vpop.f32.mrb[0].mxu0
        %v627 = vadd.f32 %v311, %v626
        %v628 = vpop.f32.mrb[0].mxu0
        %629 = vmatprep.mubr.bf16.mxu0 0
        %630 = vmatmul.mubr.bf16.gmra.mrb[0].mxu0 %v476
        %v631 = vpop.f32.mrb[0].mxu0
        %v632 = vadd.f32 %v311, %v631
        %v633 = vpop.f32.mrb[0].mxu0
        %v634 = vpop.f32.mrb[0].mxu0
        %v635 = vadd.f32 %v311, %v634
        %v636 = vpop.f32.mrb[0].mxu0
        %637 = vmatprep.mubr.bf16.mxu0 0
        %638 = vmatmul.mubr.bf16.gmra.mrb[0].mxu0 %v479
        %v639 = vpop.f32.mrb[0].mxu0
        %v640 = vadd.f32 %v311, %v639
        %v641 = vpop.f32.mrb[0].mxu0
        %v642 = vpop.f32.mrb[0].mxu0
        %v643 = vadd.f32 %v311, %v642
        %v644 = vpop.f32.mrb[0].mxu0
        %645 = vdwg.mxu0
        %v646 = vmax.f32 %v520, 0.0
        %v647 = vmax.f32 %v523, 0.0
        %v648 = vmax.f32 %v528, 0.0
        %v649 = vmax.f32 %v531, 0.0
        %v650 = vmax.f32 %v536, 0.0
        %v651 = vmax.f32 %v539, 0.0
        %v652 = vmax.f32 %v544, 0.0
        %v653 = vmax.f32 %v547, 0.0
        %v654 = vmax.f32 %v552, 0.0
        %v655 = vmax.f32 %v555, 0.0
        %v656 = vmax.f32 %v560, 0.0
        %v657 = vmax.f32 %v563, 0.0
        %v658 = vmax.f32 %v568, 0.0
        %v659 = vmax.f32 %v571, 0.0
        %v660 = vmax.f32 %v576, 0.0
        %v661 = vmax.f32 %v579, 0.0
        %v662 = vmax.f32 %v584, 0.0
        %v663 = vmax.f32 %v587, 0.0
        %v664 = vmax.f32 %v592, 0.0
        %v665 = vmax.f32 %v595, 0.0
        %v666 = vmax.f32 %v600, 0.0
        %v667 = vmax.f32 %v603, 0.0
        %v668 = vmax.f32 %v608, 0.0
        %v669 = vmax.f32 %v611, 0.0
        %v670 = vmax.f32 %v616, 0.0
        %v671 = vmax.f32 %v619, 0.0
        %v672 = vmax.f32 %v624, 0.0
        %v673 = vmax.f32 %v627, 0.0
        %v674 = vmax.f32 %v632, 0.0
        %v675 = vmax.f32 %v635, 0.0
        %v676 = vmax.f32 %v640, 0.0
        %v677 = vmax.f32 %v643, 0.0
        %v678 = vld [vmem:[%s3] sm:$0x1]
        %v680 = vlaneseq
        %v681 = vshrl.u32 %v680, 7
        %v682 = vsub.s32 0, %v681
        %v683 = vrot.slane %v678, %v682
        %v685 = vmul.f32 %v646, %v683
        %v686 = vmul.f32 %v647, %v683
        %v687 = vmul.f32 %v648, %v683
        %v688 = vmul.f32 %v649, %v683
        %v689 = vmul.f32 %v650, %v683
        %v690 = vmul.f32 %v651, %v683
        %v691 = vmul.f32 %v652, %v683
        %v692 = vmul.f32 %v653, %v683
        %v693 = vmul.f32 %v654, %v683
        %v694 = vmul.f32 %v655, %v683
        %v695 = vmul.f32 %v656, %v683
        %v696 = vmul.f32 %v657, %v683
        %v697 = vmul.f32 %v658, %v683
        %v698 = vmul.f32 %v659, %v683
        %v699 = vmul.f32 %v660, %v683
        %v700 = vmul.f32 %v661, %v683
        %v701 = vmul.f32 %v662, %v683
        %v702 = vmul.f32 %v663, %v683
        %v703 = vmul.f32 %v664, %v683
        %v704 = vmul.f32 %v665, %v683
        %v705 = vmul.f32 %v666, %v683
        %v706 = vmul.f32 %v667, %v683
        %v707 = vmul.f32 %v668, %v683
        %v708 = vmul.f32 %v669, %v683
        %v709 = vmul.f32 %v670, %v683
        %v710 = vmul.f32 %v671, %v683
        %v711 = vmul.f32 %v672, %v683
        %v712 = vmul.f32 %v673, %v683
        %v713 = vmul.f32 %v674, %v683
        %v714 = vmul.f32 %v675, %v683
        %v715 = vmul.f32 %v676, %v683
        %v716 = vmul.f32 %v677, %v683
        %v717 = vld [vmem:[%s4] sm:$0x1]
        %v719 = vlaneseq
        %v720 = vshrl.u32 %v719, 7
        %v721 = vsub.s32 0, %v720
        %v722 = vrot.slane %v717, %v721
        %v724 = vadd.f32 %v685, %v722
        %v725 = vadd.f32 %v686, %v722
        %v726 = vadd.f32 %v687, %v722
        %v727 = vadd.f32 %v688, %v722
        %v728 = vadd.f32 %v689, %v722
        %v729 = vadd.f32 %v690, %v722
        %v730 = vadd.f32 %v691, %v722
        %v731 = vadd.f32 %v692, %v722
        %v732 = vadd.f32 %v693, %v722
        %v733 = vadd.f32 %v694, %v722
        %v734 = vadd.f32 %v695, %v722
        %v735 = vadd.f32 %v696, %v722
        %v736 = vadd.f32 %v697, %v722
        %v737 = vadd.f32 %v698, %v722
        %v738 = vadd.f32 %v699, %v722
        %v739 = vadd.f32 %v700, %v722
        %v740 = vadd.f32 %v701, %v722
        %v741 = vadd.f32 %v702, %v722
        %v742 = vadd.f32 %v703, %v722
        %v743 = vadd.f32 %v704, %v722
        %v744 = vadd.f32 %v705, %v722
        %v745 = vadd.f32 %v706, %v722
        %v746 = vadd.f32 %v707, %v722
        %v747 = vadd.f32 %v708, %v722
        %v748 = vadd.f32 %v709, %v722
        %v749 = vadd.f32 %v710, %v722
        %v750 = vadd.f32 %v711, %v722
        %v751 = vadd.f32 %v712, %v722
        %v752 = vadd.f32 %v713, %v722
        %v753 = vadd.f32 %v714, %v722
        %v754 = vadd.f32 %v715, %v722
        %v755 = vadd.f32 %v716, %v722
        %v756 = vpack.c.bf16 %v725, %v724
        %v757 = vpack.c.bf16 %v727, %v726
        %v758 = vpack.c.bf16 %v729, %v728
        %v759 = vpack.c.bf16 %v731, %v730
        %v760 = vpack.c.bf16 %v733, %v732
        %v761 = vpack.c.bf16 %v735, %v734
        %v762 = vpack.c.bf16 %v737, %v736
        %v763 = vpack.c.bf16 %v739, %v738
        %v764 = vpack.c.bf16 %v741, %v740
        %v765 = vpack.c.bf16 %v743, %v742
        %v766 = vpack.c.bf16 %v745, %v744
        %v767 = vpack.c.bf16 %v747, %v746
        %v768 = vpack.c.bf16 %v749, %v748
        %v769 = vpack.c.bf16 %v751, %v750
        %v770 = vpack.c.bf16 %v753, %v752
        %v771 = vpack.c.bf16 %v755, %v754
        %772 = vst [vmem:[%s259] sm:$0xf] 0
        %773 = vst [vmem:[%s259 + $0x4] sm:$0xf] 0
        %774 = vst [vmem:[%s259 + $0x8] sm:$0x3] 0
        %775 = vst [vmem:[%s259 + $0xc] sm:$0xf] 0
        %776 = vst [vmem:[%s259 + $0x10] sm:$0xf] 0
        %777 = vst [vmem:[%s259 + $0x14] sm:$0x3] 0
        %s778 = scalar_lea.vmem %s259, 216
        %779 = vst [vmem:[%s778] sm:$0xf] 0
        %780 = vst [vmem:[%s778 + $0x4] sm:$0xf] 0
        %781 = vst [vmem:[%s778 + $0x8] sm:$0x3] 0
        %782 = vst [vmem:[%s778 + $0xc] sm:$0xf] 0
        %783 = vst [vmem:[%s778 + $0x10] sm:$0xf] 0
        %784 = vst [vmem:[%s778 + $0x14] sm:$0x3] 0
        %s785 = scalar_lea.vmem %s259, 24
        %786 = vst [vmem:[%s785] sm:$0x1] 0
        %787 = vst [vmem:[%s785 + $0xc] sm:$0x1] 0
        %788 = vst [vmem:[%s785 + $0x18] sm:$0x1] 0
        %789 = vst [vmem:[%s785 + $0x24] sm:$0x1] 0
        %790 = vst [vmem:[%s785 + $0x30] sm:$0x1] 0
        %791 = vst [vmem:[%s785 + $0x3c] sm:$0x1] 0
        %792 = vst [vmem:[%s785 + $0x48] sm:$0x1] 0
        %793 = vst [vmem:[%s785 + $0x54] sm:$0x1] 0
        %794 = vst [vmem:[%s785 + $0x60] sm:$0x1] 0
        %795 = vst [vmem:[%s785 + $0x6c] sm:$0x1] 0
        %796 = vst [vmem:[%s785 + $0x78] sm:$0x1] 0
        %797 = vst [vmem:[%s785 + $0x84] sm:$0x1] 0
        %798 = vst [vmem:[%s785 + $0x90] sm:$0x1] 0
        %799 = vst [vmem:[%s785 + $0x9c] sm:$0x1] 0
        %800 = vst [vmem:[%s785 + $0xa8] sm:$0x1] 0
        %801 = vst [vmem:[%s785 + $0xb4] sm:$0x1] 0
        %802 = vst [vmem:[%s785 + $0x8] sm:$0x2] 0
        %803 = vst [vmem:[%s785 + $0x14] sm:$0x2] 0
        %804 = vst [vmem:[%s785 + $0x20] sm:$0x2] 0
        %805 = vst [vmem:[%s785 + $0x2c] sm:$0x2] 0
        %806 = vst [vmem:[%s785 + $0x38] sm:$0x2] 0
        %807 = vst [vmem:[%s785 + $0x44] sm:$0x2] 0
        %808 = vst [vmem:[%s785 + $0x50] sm:$0x2] 0
        %809 = vst [vmem:[%s785 + $0x5c] sm:$0x2] 0
        %810 = vst [vmem:[%s785 + $0x68] sm:$0x2] 0
        %811 = vst [vmem:[%s785 + $0x74] sm:$0x2] 0
        %812 = vst [vmem:[%s785 + $0x80] sm:$0x2] 0
        %813 = vst [vmem:[%s785 + $0x8c] sm:$0x2] 0
        %814 = vst [vmem:[%s785 + $0x98] sm:$0x2] 0
        %815 = vst [vmem:[%s785 + $0xa4] sm:$0x2] 0
        %816 = vst [vmem:[%s785 + $0xb0] sm:$0x2] 0
        %817 = vst [vmem:[%s785 + $0xbc] sm:$0x2] 0
        %v834 = vunpack.c.l.b16 %v756
        %v835 = vunpack.c.h.b16 %v756
        %v836 = vunpack.c.l.b16 %v757
        %v837 = vunpack.c.h.b16 %v757
        %v838 = vunpack.c.l.b16 %v758
        %v839 = vunpack.c.h.b16 %v758
        %v840 = vunpack.c.l.b16 %v759
        %v841 = vunpack.c.h.b16 %v759
        %v842 = vunpack.c.l.b16 %v760
        %v843 = vunpack.c.h.b16 %v760
        %v844 = vunpack.c.l.b16 %v761
        %v845 = vunpack.c.h.b16 %v761
        %v846 = vunpack.c.l.b16 %v762
        %v847 = vunpack.c.h.b16 %v762
        %v848 = vunpack.c.l.b16 %v763
        %v849 = vunpack.c.h.b16 %v763
        %v850 = vunpack.c.l.b16 %v764
        %v851 = vunpack.c.h.b16 %v764
        %v852 = vunpack.c.l.b16 %v765
        %v853 = vunpack.c.h.b16 %v765
        %v854 = vunpack.c.l.b16 %v766
        %v855 = vunpack.c.h.b16 %v766
        %v856 = vunpack.c.l.b16 %v767
        %v857 = vunpack.c.h.b16 %v767
        %v858 = vunpack.c.l.b16 %v768
        %v859 = vunpack.c.h.b16 %v768
        %v860 = vunpack.c.l.b16 %v769
        %v861 = vunpack.c.h.b16 %v769
        %v862 = vunpack.c.l.b16 %v770
        %v863 = vunpack.c.h.b16 %v770
        %v864 = vunpack.c.l.b16 %v771
        %v865 = vunpack.c.h.b16 %v771
        %v866 = vpack.c.b16 %v834, %v834
        %v867 = vpack.c.b16 %v835, %v835
        %v868 = vpack.c.b16 %v836, %v836
        %v869 = vpack.c.b16 %v837, %v837
        %v870 = vpack.c.b16 %v838, %v838
        %v871 = vpack.c.b16 %v839, %v839
        %v872 = vpack.c.b16 %v840, %v840
        %v873 = vpack.c.b16 %v841, %v841
        %v874 = vpack.c.b16 %v842, %v842
        %v875 = vpack.c.b16 %v843, %v843
        %v876 = vpack.c.b16 %v844, %v844
        %v877 = vpack.c.b16 %v845, %v845
        %v878 = vpack.c.b16 %v846, %v846
        %v879 = vpack.c.b16 %v847, %v847
        %v880 = vpack.c.b16 %v848, %v848
        %v881 = vpack.c.b16 %v849, %v849
        %v882 = vpack.c.b16 %v850, %v850
        %v883 = vpack.c.b16 %v851, %v851
        %v884 = vpack.c.b16 %v852, %v852
        %v885 = vpack.c.b16 %v853, %v853
        %v886 = vpack.c.b16 %v854, %v854
        %v887 = vpack.c.b16 %v855, %v855
        %v888 = vpack.c.b16 %v856, %v856
        %v889 = vpack.c.b16 %v857, %v857
        %v890 = vpack.c.b16 %v858, %v858
        %v891 = vpack.c.b16 %v859, %v859
        %v892 = vpack.c.b16 %v860, %v860
        %v893 = vpack.c.b16 %v861, %v861
        %v894 = vpack.c.b16 %v862, %v862
        %v895 = vpack.c.b16 %v863, %v863
        %v896 = vpack.c.b16 %v864, %v864
        %v897 = vpack.c.b16 %v865, %v865
        %vm898 = vcmask 1040384
        %vm899 = vcmask 1044484
        %vm900 = vmor %vm898, %vm899
        %v901 = vrot.slane %v866, 7
        %v902 = vrot.slane %v901, 4
        %v903 = vrot.slane %v867, 7
        %v904 = vsel %vm900, %v902, %v903
        %v905 = vrot.slane %v903, 4
        %v906 = vrot.slane %v868, 7
        %v907 = vrot.slane %v906, 4
        %v908 = vrot.slane %v869, 7
        %v909 = vsel %vm900, %v907, %v908
        %v910 = vrot.slane %v908, 4
        %v911 = vrot.slane %v870, 7
        %v912 = vrot.slane %v911, 4
        %v913 = vrot.slane %v871, 7
        %v914 = vsel %vm900, %v912, %v913
        %v915 = vrot.slane %v913, 4
        %v916 = vrot.slane %v872, 7
        %v917 = vrot.slane %v916, 4
        %v918 = vrot.slane %v873, 7
        %v919 = vsel %vm900, %v917, %v918
        %v920 = vrot.slane %v918, 4
        %v921 = vrot.slane %v874, 7
        %v922 = vrot.slane %v921, 4
        %v923 = vrot.slane %v875, 7
        %v924 = vsel %vm900, %v922, %v923
        %v925 = vrot.slane %v923, 4
        %v926 = vrot.slane %v876, 7
        %v927 = vrot.slane %v926, 4
        %v928 = vrot.slane %v877, 7
        %v929 = vsel %vm900, %v927, %v928
        %v930 = vrot.slane %v928, 4
        %v931 = vrot.slane %v878, 7
        %v932 = vrot.slane %v931, 4
        %v933 = vrot.slane %v879, 7
        %v934 = vsel %vm900, %v932, %v933
        %v935 = vrot.slane %v933, 4
        %v936 = vrot.slane %v880, 7
        %v937 = vrot.slane %v936, 4
        %v938 = vrot.slane %v881, 7
        %v939 = vsel %vm900, %v937, %v938
        %v940 = vrot.slane %v938, 4
        %v941 = vrot.slane %v882, 7
        %v942 = vrot.slane %v941, 4
        %v943 = vrot.slane %v883, 7
        %v944 = vsel %vm900, %v942, %v943
        %v945 = vrot.slane %v943, 4
        %v946 = vrot.slane %v884, 7
        %v947 = vrot.slane %v946, 4
        %v948 = vrot.slane %v885, 7
        %v949 = vsel %vm900, %v947, %v948
        %v950 = vrot.slane %v948, 4
        %v951 = vrot.slane %v886, 7
        %v952 = vrot.slane %v951, 4
        %v953 = vrot.slane %v887, 7
        %v954 = vsel %vm900, %v952, %v953
        %v955 = vrot.slane %v953, 4
        %v956 = vrot.slane %v888, 7
        %v957 = vrot.slane %v956, 4
        %v958 = vrot.slane %v889, 7
        %v959 = vsel %vm900, %v957, %v958
        %v960 = vrot.slane %v958, 4
        %v961 = vrot.slane %v890, 7
        %v962 = vrot.slane %v961, 4
        %v963 = vrot.slane %v891, 7
        %v964 = vsel %vm900, %v962, %v963
        %v965 = vrot.slane %v963, 4
        %v966 = vrot.slane %v892, 7
        %v967 = vrot.slane %v966, 4
        %v968 = vrot.slane %v893, 7
        %v969 = vsel %vm900, %v967, %v968
        %v970 = vrot.slane %v968, 4
        %v971 = vrot.slane %v894, 7
        %v972 = vrot.slane %v971, 4
        %v973 = vrot.slane %v895, 7
        %v974 = vsel %vm900, %v972, %v973
        %v975 = vrot.slane %v973, 4
        %v976 = vrot.slane %v896, 7
        %v977 = vrot.slane %v976, 4
        %v978 = vrot.slane %v897, 7
        %v979 = vsel %vm900, %v977, %v978
        %v980 = vrot.slane %v978, 4
        %1029 = vst [vmem:[%s785] sm:$0xe] %v901
        %1030 = vst [vmem:[%s785 + $0x4] sm:$0xf] %v904
        %1031 = vst [vmem:[%s785 + $0x8] sm:$0x1] %v905
        %1032 = vst [vmem:[%s785 + $0xc] sm:$0xe] %v906
        %1033 = vst [vmem:[%s785 + $0x10] sm:$0xf] %v909
        %1034 = vst [vmem:[%s785 + $0x14] sm:$0x1] %v910
        %1035 = vst [vmem:[%s785 + $0x18] sm:$0xe] %v911
        %1036 = vst [vmem:[%s785 + $0x1c] sm:$0xf] %v914
        %1037 = vst [vmem:[%s785 + $0x20] sm:$0x1] %v915
        %1038 = vst [vmem:[%s785 + $0x24] sm:$0xe] %v916
        %1039 = vst [vmem:[%s785 + $0x28] sm:$0xf] %v919
        %1040 = vst [vmem:[%s785 + $0x2c] sm:$0x1] %v920
        %1041 = vst [vmem:[%s785 + $0x30] sm:$0xe] %v921
        %1042 = vst [vmem:[%s785 + $0x34] sm:$0xf] %v924
        %1043 = vst [vmem:[%s785 + $0x38] sm:$0x1] %v925
        %1044 = vst [vmem:[%s785 + $0x3c] sm:$0xe] %v926
        %1045 = vst [vmem:[%s785 + $0x40] sm:$0xf] %v929
        %1046 = vst [vmem:[%s785 + $0x44] sm:$0x1] %v930
        %1047 = vst [vmem:[%s785 + $0x48] sm:$0xe] %v931
        %1048 = vst [vmem:[%s785 + $0x4c] sm:$0xf] %v934
        %1049 = vst [vmem:[%s785 + $0x50] sm:$0x1] %v935
        %1050 = vst [vmem:[%s785 + $0x54] sm:$0xe] %v936
        %1051 = vst [vmem:[%s785 + $0x58] sm:$0xf] %v939
        %1052 = vst [vmem:[%s785 + $0x5c] sm:$0x1] %v940
        %1053 = vst [vmem:[%s785 + $0x60] sm:$0xe] %v941
        %1054 = vst [vmem:[%s785 + $0x64] sm:$0xf] %v944
        %1055 = vst [vmem:[%s785 + $0x68] sm:$0x1] %v945
        %1056 = vst [vmem:[%s785 + $0x6c] sm:$0xe] %v946
        %1057 = vst [vmem:[%s785 + $0x70] sm:$0xf] %v949
        %1058 = vst [vmem:[%s785 + $0x74] sm:$0x1] %v950
        %1059 = vst [vmem:[%s785 + $0x78] sm:$0xe] %v951
        %1060 = vst [vmem:[%s785 + $0x7c] sm:$0xf] %v954
        %1061 = vst [vmem:[%s785 + $0x80] sm:$0x1] %v955
        %1062 = vst [vmem:[%s785 + $0x84] sm:$0xe] %v956
        %1063 = vst [vmem:[%s785 + $0x88] sm:$0xf] %v959
        %1064 = vst [vmem:[%s785 + $0x8c] sm:$0x1] %v960
        %1065 = vst [vmem:[%s785 + $0x90] sm:$0xe] %v961
        %1066 = vst [vmem:[%s785 + $0x94] sm:$0xf] %v964
        %1067 = vst [vmem:[%s785 + $0x98] sm:$0x1] %v965
        %1068 = vst [vmem:[%s785 + $0x9c] sm:$0xe] %v966
        %1069 = vst [vmem:[%s785 + $0xa0] sm:$0xf] %v969
        %1070 = vst [vmem:[%s785 + $0xa4] sm:$0x1] %v970
        %1071 = vst [vmem:[%s785 + $0xa8] sm:$0xe] %v971
        %1072 = vst [vmem:[%s785 + $0xac] sm:$0xf] %v974
        %1073 = vst [vmem:[%s785 + $0xb0] sm:$0x1] %v975
        %1074 = vst [vmem:[%s785 + $0xb4] sm:$0xe] %v976
        %1075 = vst [vmem:[%s785 + $0xb8] sm:$0xf] %v979
        %1076 = vst [vmem:[%s785 + $0xbc] sm:$0x1] %v980
        %p1077 = scmp.lt.s32.totalorder %s20, 1
        %s1078 = scalar_select %p1077, %s20, 1
        %s1079 = smul.addr %s1078, 60
        %s1080 = smul.addr %s1079, 4
        %s1081 = scalar_lea.vmem %s5, %s1080
        // Predicated region
        $region49: #{tpu_custom_call.1} parent=39 // pred_check
          %p1082 = pneg %p148
        $region50: #{tpu_custom_call.1} parent=39 // pred_check_branch
          %1084 = sbr.rel (%p1082) target = $region52
        $region51: #{tpu_custom_call.1} parent=39 // pred_region
          _
        $region52: #{tpu_custom_call.1} parent=39 // pred_fallthru
          _
      $region40: #{tpu_custom_call.1} parent=5 // pred_fallthru
        _
      %p1085 = scmp.le.s32.totalorder 2, %s15
      // Predicated region
      $region53: #{tpu_custom_call.1} parent=5 // pred_check
        %p1086 = pneg %p1085
      $region54: #{tpu_custom_call.1} parent=5 // pred_check_branch
        %1088 = sbr.rel (%p1086) target = $region56
      $region55: #{tpu_custom_call.1} parent=5 // pred_region
        %s1089 = ssub.s32 %s15, 2
        // Predicated region
        $region57: #{tpu_custom_call.1} parent=55 // pred_check
          %p1090 = pneg %p154
        $region58: #{tpu_custom_call.1} parent=55 // pred_check_branch
          %1092 = sbr.rel (%p1090) target = $region60
        $region59: #{tpu_custom_call.1} parent=55 // pred_region
          %p1093 = scmp.lt.s32.totalorder %s21, 1
          %s1094 = scalar_select %p1093, %s21, 1
          %s1095 = smul.addr %s1094, 60
          %s1096 = smul.addr %s1095, 4
          %s1097 = scalar_lea.vmem %s5, %s1096
        $region60: #{tpu_custom_call.1} parent=55 // pred_fallthru
          _
      $region56: #{tpu_custom_call.1} parent=5 // pred_fallthru
        _
    $region6: #{tpu_custom_call.1} parent=1 // loop_footer
      %s19 = sadd.s32 1, %s15
    $region7: #{tpu_custom_call.1} parent=1 // loop_footer_branch
      %14 = sbr.rel target = $region3
    $region8: #{tpu_custom_call.1} parent=1 // loop_exit
      _
    %1098 = vsyncpa [#allocation3], 1
    %s1099 = scalar_lea.sflag [#allocation3], 1
    %1100 = vsyncpa %s1099, 1
    %1101 = vsyncpa [#allocation5], 1

</llo_original>
